<compile_context>
chip_gen: v6e
topology: v6e:2x2x1
jax: 0.10.0
libtpu: 0.0.40
codegen_flags: <defaults>
</compile_context>

<pallas_src>
from functools import partial

import jax
import jax.numpy as jnp
from jax.experimental import pallas as pl
from jax.experimental.pallas import tpu as pltpu


# ----------------------------- Pallas LSTM kernel -----------------------------

def _lstm_chunk_kernel(gx_ref, whh_ref, h0_ref, c0_ref,
                       out_ref, hn_ref, cn_ref, h_sc, c_sc):
    # gx_ref : (B, TC*4H) bf16  lane-dense chunk of x @ W_ih^T + b_ih + b_hh
    # whh_ref: (H, 4H)    bf16  recurrent weights (transposed), VMEM-resident
    # out_ref: (B, TC*H)  f32   lane-dense hidden-state slab for this chunk
    # hn/cn  : (B, H)     f32   final LSTM state (resident; overwritten each chunk)
    # h_sc/c_sc: (B, H)   f32   recurrent state carried across chunks
    B, H = h_sc.shape
    G = whh_ref.shape[-1]              # 4H
    TC = gx_ref.shape[-1] // G

    @pl.when(pl.program_id(0) == 0)
    def _init():
        h_sc[...] = h0_ref[...].astype(jnp.float32)
        c_sc[...] = c0_ref[...].astype(jnp.float32)

    w_hh = whh_ref[...]                # loaded once per chunk (bf16)
    # TODO(synk): for long per-chunk recurrences, pltpu.matmul_push_rhs/acc_lhs/pop
    # could keep w_hh staged in MXU weight registers across all TC steps instead
    # of re-staging it inside jnp.dot every iteration.

    # Hoisted lane mask for the g (cell-candidate) gate range [2H, 3H);
    # JAX does not CSE iotas/broadcasts, so keep it out of the step loop.
    lane = jax.lax.broadcasted_iota(jnp.int32, (B, G), 1)
    g_mask = (lane >= 2 * H) & (lane < 3 * H)

    h = h_sc[...]
    c = c_sc[...]
    # Static full unroll: TC is capped small by _pick_chunk. For large TC switch
    # to lax.fori_loop(..., unroll=4..8) to bound vreg live ranges.
    for t in range(TC):
        gx = gx_ref[:, t * G:(t + 1) * G].astype(jnp.float32)          # (B, 4H)
        # NOTE: h is rounded to bf16 each step for the MXU; drift vs an f32
        # recurrence grows with T (covered by the test tolerance at T=8).
        gates = gx + jnp.dot(h.astype(jnp.bfloat16), w_hh,
                             preferred_element_type=jnp.float32)
        # Single EUP pass: sigmoid(x) = 0.5 * (tanh(x / 2) + 1).
        pre = jnp.where(g_mask, gates, 0.5 * gates)
        th = jnp.tanh(pre)
        act = jnp.where(g_mask, th, 0.5 * th + 0.5)
        i_g = act[:, 0 * H:1 * H]
        f_g = act[:, 1 * H:2 * H]
        g_g = act[:, 2 * H:3 * H]
        o_g = act[:, 3 * H:4 * H]
        c = f_g * c + i_g * g_g
        h = o_g * jnp.tanh(c)
        out_ref[:, t * H:(t + 1) * H] = h.astype(out_ref.dtype)

    h_sc[...] = h
    c_sc[...] = c
    # Resident constant-index outputs: overwriting every chunk is essentially
    # free and the final HBM writeback carries the last chunk's values.
    hn_ref[...] = h.astype(hn_ref.dtype)
    cn_ref[...] = c.astype(cn_ref.dtype)


def _pick_chunk(T, H, G, B, itemsize, budget_bytes=2 << 20, max_unroll=16):
    """Largest chunk TC that (a) divides T, (b) keeps the (B, TC*4H) block
    lane-aligned (TC*H % 128 == 0) unless TC == T, (c) keeps one gates buffer
    within a conservative budget that, double-buffered, fits default scoped VMEM
    on v5e/v6e/v7x, and (d) keeps the fully-unrolled step loop small."""
    valid = [tc for tc in range(1, T + 1)
             if T % tc == 0 and (tc == T or (tc * H) % 128 == 0)]
    good = [tc for tc in valid
            if tc <= max_unroll and B * tc * G * itemsize <= budget_bytes]
    return max(good) if good else min(valid)


def lstm_pallas(gates_flat_bf16, w_hh_t_bf16, h0, c0, *, chunk=None):
    """gates_flat_bf16: (B, T*4H) bf16 precomputed input projection (bias folded).
    w_hh_t_bf16: (H, 4H) bf16. Returns (out_flat (B, T*H) f32, h_n, c_n (B, H))."""
    B, TG = gates_flat_bf16.shape
    H, G = w_hh_t_bf16.shape
    assert G == 4 * H and TG % G == 0
    T = TG // G

    TC = chunk if chunk is not None else _pick_chunk(
        T, H, G, B, gates_flat_bf16.dtype.itemsize)
    assert T % TC == 0, "chunk must divide T"
    assert TC == T or (TC * H) % 128 == 0, "chunk*H must be a multiple of 128"

    out_shapes = (
        jax.ShapeDtypeStruct((B, T * H), jnp.float32),   # hidden states, lane-dense
        jax.ShapeDtypeStruct((B, H), jnp.float32),       # h_n
        jax.ShapeDtypeStruct((B, H), jnp.float32),       # c_n
    )
    grid_spec = pltpu.PrefetchScalarGridSpec(
        num_scalar_prefetch=0,
        grid=(T // TC,),
        in_specs=[
            # O(T) tensor: pipelined bf16 chunks (next chunk prefetched while the
            # current chunk's recurrence runs).
            pl.BlockSpec((B, TC * G), lambda c: (0, c)),
            # Invariant blocks (VMEM-resident). At large H on v7x (64 MiB VMEM),
            # add pipeline_mode=pl.Buffered(1) here and/or raise vmem_limit_bytes.
            pl.BlockSpec((H, G), lambda c: (0, 0)),      # w_hh^T (bf16)
            pl.BlockSpec((B, H), lambda c: (0, 0)),      # h0
            pl.BlockSpec((B, H), lambda c: (0, 0)),      # c0
        ],
        out_specs=[
            pl.BlockSpec((B, TC * H), lambda c: (0, c)),  # lane-dense output block
            pl.BlockSpec((B, H), lambda c: (0, 0)),       # h_n (resident)
            pl.BlockSpec((B, H), lambda c: (0, 0)),       # c_n (resident)
        ],
        scratch_shapes=[
            pltpu.VMEM((B, H), jnp.float32),              # h state
            pltpu.VMEM((B, H), jnp.float32),              # c state
        ],
    )
    return pl.pallas_call(
        _lstm_chunk_kernel,
        out_shape=out_shapes,
        grid_spec=grid_spec,
        compiler_params=pltpu.CompilerParams(
            dimension_semantics=("arbitrary",)),          # sequential recurrence
    )(gates_flat_bf16, w_hh_t_bf16, h0, c0)


# ------------------------------- Decoder forward -------------------------------

def reshape_state(state):
    h_state, c_state = state
    new_h = jnp.concatenate([h_state[:-1], h_state[1:]], axis=2)
    new_c = jnp.concatenate([c_state[:-1], c_state[1:]], axis=2)
    return (new_h, new_c)


def init_decoder_params(key, hidden_size, tgt_vocab_size, padding_idx):
    ks = jax.random.split(key, 5)
    emb = jax.random.normal(ks[0], (tgt_vocab_size, hidden_size), jnp.float32) * 0.1
    emb = emb.at[padding_idx].set(0.0)        # nn.Embedding padding_idx row is zero
    scale = 1.0 / jnp.sqrt(hidden_size)
    w_ih = jax.random.uniform(ks[1], (4 * hidden_size, hidden_size), jnp.float32, -scale, scale)
    w_hh = jax.random.uniform(ks[2], (4 * hidden_size, hidden_size), jnp.float32, -scale, scale)
    b_ih = jax.random.uniform(ks[3], (4 * hidden_size,), jnp.float32, -scale, scale)
    b_hh = jax.random.uniform(ks[4], (4 * hidden_size,), jnp.float32, -scale, scale)
    return dict(embedding=emb, w_ih=w_ih, w_hh=w_hh, b_ih=b_ih, b_hh=b_hh)


@partial(jax.jit, static_argnames=("chunk",))
def decoder_forward(params, tgt, dec_h, dec_c, *, chunk=None):
    """Eval-mode Decoder.forward with attn=None (batch_first single-layer LSTM).

    tgt: (B, T) int32; dec_h/dec_c: (L, B, Hs) encoder LSTM state.
    Returns outputs (B, T, H) and (h_n, c_n) each (1, B, H).
    """
    if dec_h.shape[0] == 2:
        dec_h, dec_c = reshape_state((dec_h, dec_c))

    emb = params["embedding"][tgt]                            # (B, T, H) gather (glue)
    # TODO(synk): dropout and the outputs[:, :-1, :] slice are training-only; eval mode here.
    # TODO(synk): self.attn is an injected module; this config models attn=None.

    # Hoisted input projection (no recurrence dependency): one batched MXU matmul
    # for all T, bf16 operands + f32 accumulation, bias folded in, batch-first.
    # Stored bf16 since it is the only O(T) tensor the kernel streams from HBM.
    bias = (params["b_ih"] + params["b_hh"])[None, None, :]          # (1, 1, 4H)
    gates_x = jnp.einsum("bth,hg->btg",
                         emb.astype(jnp.bfloat16),
                         params["w_ih"].T.astype(jnp.bfloat16),
                         preferred_element_type=jnp.float32) + bias  # (B, T, 4H) f32
    B, T = tgt.shape
    H = params["w_hh"].shape[1]
    gates_flat = gates_x.astype(jnp.bfloat16).reshape(B, T * 4 * H)  # lane-dense slab

    w_hh_t = params["w_hh"].T.astype(jnp.bfloat16)                   # (H, 4H) bf16

    # NOTE: biggest throughput lever at these shapes is sublane fill — batch
    # independent decode streams / beam hypotheses so B approaches 8; per-step
    # latency is essentially constant up to B=8.
    out_flat, h_n, c_n = lstm_pallas(gates_flat, w_hh_t, dec_h[0], dec_c[0],
                                     chunk=chunk)

    outputs = out_flat.reshape(B, T, H)                              # reshape only, no transpose
    return outputs, (h_n[None], c_n[None])


# --------------------------------- reference -----------------------------------

def lstm_reference(emb, w_ih, w_hh, b_ih, b_hh, h0, c0):
    """Pure-JAX PyTorch-semantics LSTM (batch_first, f32). emb: (B, T, H)."""
    H = h0.shape[-1]

    def step(carry, x_t):
        h, c = carry
        gates = x_t @ w_ih.T + h @ w_hh.T + b_ih + b_hh
        i = jax.nn.sigmoid(gates[:, 0 * H:1 * H])
        f = jax.nn.sigmoid(gates[:, 1 * H:2 * H])
        g = jnp.tanh(gates[:, 2 * H:3 * H])
        o = jax.nn.sigmoid(gates[:, 3 * H:4 * H])
        c = f * c + i * g
        h = o * jnp.tanh(c)
        return (h, c), h

    (h_n, c_n), outs = jax.lax.scan(step, (h0, c0), jnp.transpose(emb, (1, 0, 2)))
    return jnp.transpose(outs, (1, 0, 2)), h_n, c_n


# ----------------------------------- main ---------------------------------------

if __name__ == "__main__":
    B, T, H = 2, 8, 32
    VOCAB, PAD = 50, 1

    key = jax.random.PRNGKey(0)
    k_params, k_tgt, k_h, k_c = jax.random.split(key, 4)

    params = init_decoder_params(k_params, H, VOCAB, PAD)
    tgt = jax.random.randint(k_tgt, (B, T), 0, VOCAB, dtype=jnp.int32)

    # Encoder final state from a bidirectional encoder: (2, B, H//2) -> exercises reshape_state.
    dec_h = jax.random.normal(k_h, (2, B, H // 2), jnp.float32) * 0.1
    dec_c = jax.random.normal(k_c, (2, B, H // 2), jnp.float32) * 0.1

    # Pure-JAX f32 reference (bf16 MXU operands + bf16 gates_x in the kernel path
    # -> tolerance loosened accordingly).
    rh, rc = reshape_state((dec_h, dec_c))
    emb_ref = params["embedding"][tgt]
    ref_out, ref_h, ref_c = lstm_reference(
        emb_ref, params["w_ih"], params["w_hh"], params["b_ih"], params["b_hh"],
        rh[0], rc[0])

    # Run 1: auto chunk (grid=(1,) at this tiny T).
    outputs, (h_n, c_n) = decoder_forward(params, tgt, dec_h, dec_c)
    outputs = jax.block_until_ready(outputs)
    assert outputs.shape == (B, T, H)
    assert h_n.shape == (1, B, H) and c_n.shape == (1, B, H)
    assert jnp.allclose(outputs, ref_out, atol=3e-2), "outputs mismatch (auto chunk)"
    assert jnp.allclose(h_n[0], ref_h, atol=3e-2), "h_n mismatch (auto chunk)"
    assert jnp.allclose(c_n[0], ref_c, atol=3e-2), "c_n mismatch (auto chunk)"

    # Run 2: explicit chunk=4 -> grid=(2,), exercises pipelined chunks and the
    # cross-chunk VMEM state carry / per-chunk h_n/c_n writes.
    outputs2, (h_n2, c_n2) = decoder_forward(params, tgt, dec_h, dec_c, chunk=4)
    outputs2 = jax.block_until_ready(outputs2)
    assert jnp.allclose(outputs2, ref_out, atol=3e-2), "outputs mismatch (chunk=4)"
    assert jnp.allclose(h_n2[0], ref_h, atol=3e-2), "h_n mismatch (chunk=4)"
    assert jnp.allclose(c_n2[0], ref_c, atol=3e-2), "c_n mismatch (chunk=4)"

    print("KERNEL_OK")
</pallas_src>

<mosaic_0001>
module attributes {stable_mosaic.version = 11 : i64} {
  func.func @_lstm_chunk_kernel(%arg0: i32, %arg1: memref<2x1024xbf16, #tpu.memory_space<vmem>>, %arg2: memref<32x128xbf16, #tpu.memory_space<vmem>>, %arg3: memref<2x32xf32, #tpu.memory_space<vmem>>, %arg4: memref<2x32xf32, #tpu.memory_space<vmem>>, %arg5: memref<2x256xf32, #tpu.memory_space<vmem>>, %arg6: memref<2x32xf32, #tpu.memory_space<vmem>>, %arg7: memref<2x32xf32, #tpu.memory_space<vmem>>, %arg8: memref<2x32xf32, #tpu.memory_space<vmem>>, %arg9: memref<2x32xf32, #tpu.memory_space<vmem>>) attributes {dimension_semantics = [#tpu.dimension_semantics<arbitrary>], iteration_bounds = array<i64: 1>, scalar_prefetch = 0 : i64, scratch_operands = 2 : i64, tpu.core_type = #tpu.core_type<tc>, window_params = [{transform_indices = @transform_0, window_bounds = array<i64: 2, 1024>}, {pipeline_mode = #tpu.pipeline_mode<synchronous>, transform_indices = @transform_1, window_bounds = array<i64: 32, 128>}, {pipeline_mode = #tpu.pipeline_mode<synchronous>, transform_indices = @transform_2, window_bounds = array<i64: 2, 32>}, {pipeline_mode = #tpu.pipeline_mode<synchronous>, transform_indices = @transform_3, window_bounds = array<i64: 2, 32>}, {transform_indices = @transform_4, window_bounds = array<i64: 2, 256>}, {pipeline_mode = #tpu.pipeline_mode<synchronous>, transform_indices = @transform_5, window_bounds = array<i64: 2, 32>}, {pipeline_mode = #tpu.pipeline_mode<synchronous>, transform_indices = @transform_6, window_bounds = array<i64: 2, 32>}]} {
    %c0_i32 = arith.constant 0 : i32
    %0 = arith.cmpi eq, %arg0, %c0_i32 : i32
    %1 = arith.extui %0 : i1 to i32
    %c0_i32_0 = arith.constant 0 : i32
    %2 = arith.cmpi ne, %1, %c0_i32_0 : i32
    scf.if %2 {
      %c0_64 = arith.constant 0 : index
      %c0_65 = arith.constant 0 : index
      %208 = vector.load %arg3[%c0_64, %c0_65] : memref<2x32xf32, #tpu.memory_space<vmem>>, vector<2x32xf32>
      %c0_66 = arith.constant 0 : index
      %c0_67 = arith.constant 0 : index
      %209 = vector.load %arg8[%c0_66, %c0_67] : memref<2x32xf32, #tpu.memory_space<vmem>>, vector<2x32xf32>
      tpu.vector_store %arg8[%c0_66, %c0_67], %208 {strides = array<i32>} : memref<2x32xf32, #tpu.memory_space<vmem>>, vector<2x32xf32>,
      %c0_68 = arith.constant 0 : index
      %c0_69 = arith.constant 0 : index
      %210 = vector.load %arg4[%c0_68, %c0_69] : memref<2x32xf32, #tpu.memory_space<vmem>>, vector<2x32xf32>
      %c0_70 = arith.constant 0 : index
      %c0_71 = arith.constant 0 : index
      %211 = vector.load %arg9[%c0_70, %c0_71] : memref<2x32xf32, #tpu.memory_space<vmem>>, vector<2x32xf32>
      tpu.vector_store %arg9[%c0_70, %c0_71], %210 {strides = array<i32>} : memref<2x32xf32, #tpu.memory_space<vmem>>, vector<2x32xf32>,
    } else {
    }
    %c0 = arith.constant 0 : index
    %c0_1 = arith.constant 0 : index
    %3 = vector.load %arg2[%c0, %c0_1] : memref<32x128xbf16, #tpu.memory_space<vmem>>, vector<32x128xbf16>
    %4 = tpu.iota {dimensions = array<i32: 1>} : vector<2x128xi32>
    %c64_i32 = arith.constant 64 : i32
    %5 = vector.broadcast %c64_i32 : i32 to vector<2x128xi32>
    %6 = arith.cmpi sge, %4, %5 : vector<2x128xi32>
    %c96_i32 = arith.constant 96 : i32
    %7 = vector.broadcast %c96_i32 : i32 to vector<2x128xi32>
    %8 = arith.cmpi slt, %4, %7 : vector<2x128xi32>
    %9 = arith.andi %6, %8 : vector<2x128xi1>
    %c0_2 = arith.constant 0 : index
    %c0_3 = arith.constant 0 : index
    %10 = vector.load %arg8[%c0_2, %c0_3] : memref<2x32xf32, #tpu.memory_space<vmem>>, vector<2x32xf32>
    %c0_4 = arith.constant 0 : index
    %c0_5 = arith.constant 0 : index
    %11 = vector.load %arg9[%c0_4, %c0_5] : memref<2x32xf32, #tpu.memory_space<vmem>>, vector<2x32xf32>
    %c0_6 = arith.constant 0 : index
    %c0_7 = arith.constant 0 : index
    %12 = vector.load %arg1[%c0_6, %c0_7] : memref<2x1024xbf16, #tpu.memory_space<vmem>>, vector<2x128xbf16>
    %13 = arith.extf %12 : vector<2x128xbf16> to vector<2x128xf32>
    %14 = arith.truncf %10 : vector<2x32xf32> to vector<2x32xbf16>
    %cst = arith.constant dense<0.000000e+00> : vector<2x128xf32>
    %15 = tpu.matmul %14, %3, %cst {dimension_numbers = #tpu.dot_dimension_numbers<[1], [0], [0], [1], [0, 0, 1, 1], [], []>} : vector<2x32xbf16>, vector<32x128xbf16>, vector<2x128xf32> -> vector<2x128xf32>
    %16 = arith.addf %13, %15 : vector<2x128xf32>
    %cst_8 = arith.constant 5.000000e-01 : f32
    %17 = vector.broadcast %cst_8 : f32 to vector<2x128xf32>
    %18 = arith.mulf %17, %16 : vector<2x128xf32>
    %19 = arith.select %9, %16, %18 : vector<2x128xi1>, vector<2x128xf32>
    %20 = math.tanh %19 : vector<2x128xf32>
    %cst_9 = arith.constant 5.000000e-01 : f32
    %21 = vector.broadcast %cst_9 : f32 to vector<2x128xf32>
    %22 = arith.mulf %21, %20 : vector<2x128xf32>
    %cst_10 = arith.constant 5.000000e-01 : f32
    %23 = vector.broadcast %cst_10 : f32 to vector<2x128xf32>
    %24 = arith.addf %22, %23 : vector<2x128xf32>
    %25 = arith.select %9, %20, %24 : vector<2x128xi1>, vector<2x128xf32>
    %26 = vector.extract_strided_slice %25 {offsets = [0, 0], sizes = [2, 32], strides = [1, 1]} : vector<2x128xf32> to vector<2x32xf32>
    %27 = vector.extract_strided_slice %25 {offsets = [0, 32], sizes = [2, 32], strides = [1, 1]} : vector<2x128xf32> to vector<2x32xf32>
    %28 = vector.extract_strided_slice %25 {offsets = [0, 64], sizes = [2, 32], strides = [1, 1]} : vector<2x128xf32> to vector<2x32xf32>
    %29 = vector.extract_strided_slice %25 {offsets = [0, 96], sizes = [2, 32], strides = [1, 1]} : vector<2x128xf32> to vector<2x32xf32>
    %30 = arith.mulf %27, %11 : vector<2x32xf32>
    %31 = arith.mulf %26, %28 : vector<2x32xf32>
    %32 = arith.addf %30, %31 : vector<2x32xf32>
    %33 = math.tanh %32 : vector<2x32xf32>
    %34 = arith.mulf %29, %33 : vector<2x32xf32>
    %c0_11 = arith.constant 0 : index
    %c0_12 = arith.constant 0 : index
    %35 = vector.load %arg5[%c0_11, %c0_12] : memref<2x256xf32, #tpu.memory_space<vmem>>, vector<2x32xf32>
    tpu.vector_store %arg5[%c0_11, %c0_12], %34 {strides = array<i32>} : memref<2x256xf32, #tpu.memory_space<vmem>>, vector<2x32xf32>,
    %c0_13 = arith.constant 0 : index
    %c128 = arith.constant 128 : index
    %36 = vector.load %arg1[%c0_13, %c128] : memref<2x1024xbf16, #tpu.memory_space<vmem>>, vector<2x128xbf16>
    %37 = arith.extf %36 : vector<2x128xbf16> to vector<2x128xf32>
    %38 = arith.truncf %34 : vector<2x32xf32> to vector<2x32xbf16>
    %cst_14 = arith.constant dense<0.000000e+00> : vector<2x128xf32>
    %39 = tpu.matmul %38, %3, %cst_14 {dimension_numbers = #tpu.dot_dimension_numbers<[1], [0], [0], [1], [0, 0, 1, 1], [], []>} : vector<2x32xbf16>, vector<32x128xbf16>, vector<2x128xf32> -> vector<2x128xf32>
    %40 = arith.addf %37, %39 : vector<2x128xf32>
    %cst_15 = arith.constant 5.000000e-01 : f32
    %41 = vector.broadcast %cst_15 : f32 to vector<2x128xf32>
    %42 = arith.mulf %41, %40 : vector<2x128xf32>
    %43 = arith.select %9, %40, %42 : vector<2x128xi1>, vector<2x128xf32>
    %44 = math.tanh %43 : vector<2x128xf32>
    %cst_16 = arith.constant 5.000000e-01 : f32
    %45 = vector.broadcast %cst_16 : f32 to vector<2x128xf32>
    %46 = arith.mulf %45, %44 : vector<2x128xf32>
    %cst_17 = arith.constant 5.000000e-01 : f32
    %47 = vector.broadcast %cst_17 : f32 to vector<2x128xf32>
    %48 = arith.addf %46, %47 : vector<2x128xf32>
    %49 = arith.select %9, %44, %48 : vector<2x128xi1>, vector<2x128xf32>
    %50 = vector.extract_strided_slice %49 {offsets = [0, 0], sizes = [2, 32], strides = [1, 1]} : vector<2x128xf32> to vector<2x32xf32>
    %51 = vector.extract_strided_slice %49 {offsets = [0, 32], sizes = [2, 32], strides = [1, 1]} : vector<2x128xf32> to vector<2x32xf32>
    %52 = vector.extract_strided_slice %49 {offsets = [0, 64], sizes = [2, 32], strides = [1, 1]} : vector<2x128xf32> to vector<2x32xf32>
    %53 = vector.extract_strided_slice %49 {offsets = [0, 96], sizes = [2, 32], strides = [1, 1]} : vector<2x128xf32> to vector<2x32xf32>
    %54 = arith.mulf %51, %32 : vector<2x32xf32>
    %55 = arith.mulf %50, %52 : vector<2x32xf32>
    %56 = arith.addf %54, %55 : vector<2x32xf32>
    %57 = math.tanh %56 : vector<2x32xf32>
    %58 = arith.mulf %53, %57 : vector<2x32xf32>
    %c0_18 = arith.constant 0 : index
    %c32 = arith.constant 32 : index
    %59 = vector.load %arg5[%c0_18, %c32] : memref<2x256xf32, #tpu.memory_space<vmem>>, vector<2x32xf32>
    tpu.vector_store %arg5[%c0_18, %c32], %58 {strides = array<i32>} : memref<2x256xf32, #tpu.memory_space<vmem>>, vector<2x32xf32>,
    %c0_19 = arith.constant 0 : index
    %c256 = arith.constant 256 : index
    %60 = vector.load %arg1[%c0_19, %c256] : memref<2x1024xbf16, #tpu.memory_space<vmem>>, vector<2x128xbf16>
    %61 = arith.extf %60 : vector<2x128xbf16> to vector<2x128xf32>
    %62 = arith.truncf %58 : vector<2x32xf32> to vector<2x32xbf16>
    %cst_20 = arith.constant dense<0.000000e+00> : vector<2x128xf32>
    %63 = tpu.matmul %62, %3, %cst_20 {dimension_numbers = #tpu.dot_dimension_numbers<[1], [0], [0], [1], [0, 0, 1, 1], [], []>} : vector<2x32xbf16>, vector<32x128xbf16>, vector<2x128xf32> -> vector<2x128xf32>
    %64 = arith.addf %61, %63 : vector<2x128xf32>
    %cst_21 = arith.constant 5.000000e-01 : f32
    %65 = vector.broadcast %cst_21 : f32 to vector<2x128xf32>
    %66 = arith.mulf %65, %64 : vector<2x128xf32>
    %67 = arith.select %9, %64, %66 : vector<2x128xi1>, vector<2x128xf32>
    %68 = math.tanh %67 : vector<2x128xf32>
    %cst_22 = arith.constant 5.000000e-01 : f32
    %69 = vector.broadcast %cst_22 : f32 to vector<2x128xf32>
    %70 = arith.mulf %69, %68 : vector<2x128xf32>
    %cst_23 = arith.constant 5.000000e-01 : f32
    %71 = vector.broadcast %cst_23 : f32 to vector<2x128xf32>
    %72 = arith.addf %70, %71 : vector<2x128xf32>
    %73 = arith.select %9, %68, %72 : vector<2x128xi1>, vector<2x128xf32>
    %74 = vector.extract_strided_slice %73 {offsets = [0, 0], sizes = [2, 32], strides = [1, 1]} : vector<2x128xf32> to vector<2x32xf32>
    %75 = vector.extract_strided_slice %73 {offsets = [0, 32], sizes = [2, 32], strides = [1, 1]} : vector<2x128xf32> to vector<2x32xf32>
    %76 = vector.extract_strided_slice %73 {offsets = [0, 64], sizes = [2, 32], strides = [1, 1]} : vector<2x128xf32> to vector<2x32xf32>
    %77 = vector.extract_strided_slice %73 {offsets = [0, 96], sizes = [2, 32], strides = [1, 1]} : vector<2x128xf32> to vector<2x32xf32>
    %78 = arith.mulf %75, %56 : vector<2x32xf32>
    %79 = arith.mulf %74, %76 : vector<2x32xf32>
    %80 = arith.addf %78, %79 : vector<2x32xf32>
    %81 = math.tanh %80 : vector<2x32xf32>
    %82 = arith.mulf %77, %81 : vector<2x32xf32>
    %c0_24 = arith.constant 0 : index
    %c64 = arith.constant 64 : index
    %83 = vector.load %arg5[%c0_24, %c64] : memref<2x256xf32, #tpu.memory_space<vmem>>, vector<2x32xf32>
    tpu.vector_store %arg5[%c0_24, %c64], %82 {strides = array<i32>} : memref<2x256xf32, #tpu.memory_space<vmem>>, vector<2x32xf32>,
    %c0_25 = arith.constant 0 : index
    %c384 = arith.constant 384 : index
    %84 = vector.load %arg1[%c0_25, %c384] : memref<2x1024xbf16, #tpu.memory_space<vmem>>, vector<2x128xbf16>
    %85 = arith.extf %84 : vector<2x128xbf16> to vector<2x128xf32>
    %86 = arith.truncf %82 : vector<2x32xf32> to vector<2x32xbf16>
    %cst_26 = arith.constant dense<0.000000e+00> : vector<2x128xf32>
    %87 = tpu.matmul %86, %3, %cst_26 {dimension_numbers = #tpu.dot_dimension_numbers<[1], [0], [0], [1], [0, 0, 1, 1], [], []>} : vector<2x32xbf16>, vector<32x128xbf16>, vector<2x128xf32> -> vector<2x128xf32>
    %88 = arith.addf %85, %87 : vector<2x128xf32>
    %cst_27 = arith.constant 5.000000e-01 : f32
    %89 = vector.broadcast %cst_27 : f32 to vector<2x128xf32>
    %90 = arith.mulf %89, %88 : vector<2x128xf32>
    %91 = arith.select %9, %88, %90 : vector<2x128xi1>, vector<2x128xf32>
    %92 = math.tanh %91 : vector<2x128xf32>
    %cst_28 = arith.constant 5.000000e-01 : f32
    %93 = vector.broadcast %cst_28 : f32 to vector<2x128xf32>
    %94 = arith.mulf %93, %92 : vector<2x128xf32>
    %cst_29 = arith.constant 5.000000e-01 : f32
    %95 = vector.broadcast %cst_29 : f32 to vector<2x128xf32>
    %96 = arith.addf %94, %95 : vector<2x128xf32>
    %97 = arith.select %9, %92, %96 : vector<2x128xi1>, vector<2x128xf32>
    %98 = vector.extract_strided_slice %97 {offsets = [0, 0], sizes = [2, 32], strides = [1, 1]} : vector<2x128xf32> to vector<2x32xf32>
    %99 = vector.extract_strided_slice %97 {offsets = [0, 32], sizes = [2, 32], strides = [1, 1]} : vector<2x128xf32> to vector<2x32xf32>
    %100 = vector.extract_strided_slice %97 {offsets = [0, 64], sizes = [2, 32], strides = [1, 1]} : vector<2x128xf32> to vector<2x32xf32>
    %101 = vector.extract_strided_slice %97 {offsets = [0, 96], sizes = [2, 32], strides = [1, 1]} : vector<2x128xf32> to vector<2x32xf32>
    %102 = arith.mulf %99, %80 : vector<2x32xf32>
    %103 = arith.mulf %98, %100 : vector<2x32xf32>
    %104 = arith.addf %102, %103 : vector<2x32xf32>
    %105 = math.tanh %104 : vector<2x32xf32>
    %106 = arith.mulf %101, %105 : vector<2x32xf32>
    %c0_30 = arith.constant 0 : index
    %c96 = arith.constant 96 : index
    %107 = vector.load %arg5[%c0_30, %c96] : memref<2x256xf32, #tpu.memory_space<vmem>>, vector<2x32xf32>
    tpu.vector_store %arg5[%c0_30, %c96], %106 {strides = array<i32>} : memref<2x256xf32, #tpu.memory_space<vmem>>, vector<2x32xf32>,
    %c0_31 = arith.constant 0 : index
    %c512 = arith.constant 512 : index
    %108 = vector.load %arg1[%c0_31, %c512] : memref<2x1024xbf16, #tpu.memory_space<vmem>>, vector<2x128xbf16>
    %109 = arith.extf %108 : vector<2x128xbf16> to vector<2x128xf32>
    %110 = arith.truncf %106 : vector<2x32xf32> to vector<2x32xbf16>
    %cst_32 = arith.constant dense<0.000000e+00> : vector<2x128xf32>
    %111 = tpu.matmul %110, %3, %cst_32 {dimension_numbers = #tpu.dot_dimension_numbers<[1], [0], [0], [1], [0, 0, 1, 1], [], []>} : vector<2x32xbf16>, vector<32x128xbf16>, vector<2x128xf32> -> vector<2x128xf32>
    %112 = arith.addf %109, %111 : vector<2x128xf32>
    %cst_33 = arith.constant 5.000000e-01 : f32
    %113 = vector.broadcast %cst_33 : f32 to vector<2x128xf32>
    %114 = arith.mulf %113, %112 : vector<2x128xf32>
    %115 = arith.select %9, %112, %114 : vector<2x128xi1>, vector<2x128xf32>
    %116 = math.tanh %115 : vector<2x128xf32>
    %cst_34 = arith.constant 5.000000e-01 : f32
    %117 = vector.broadcast %cst_34 : f32 to vector<2x128xf32>
    %118 = arith.mulf %117, %116 : vector<2x128xf32>
    %cst_35 = arith.constant 5.000000e-01 : f32
    %119 = vector.broadcast %cst_35 : f32 to vector<2x128xf32>
    %120 = arith.addf %118, %119 : vector<2x128xf32>
    %121 = arith.select %9, %116, %120 : vector<2x128xi1>, vector<2x128xf32>
    %122 = vector.extract_strided_slice %121 {offsets = [0, 0], sizes = [2, 32], strides = [1, 1]} : vector<2x128xf32> to vector<2x32xf32>
    %123 = vector.extract_strided_slice %121 {offsets = [0, 32], sizes = [2, 32], strides = [1, 1]} : vector<2x128xf32> to vector<2x32xf32>
    %124 = vector.extract_strided_slice %121 {offsets = [0, 64], sizes = [2, 32], strides = [1, 1]} : vector<2x128xf32> to vector<2x32xf32>
    %125 = vector.extract_strided_slice %121 {offsets = [0, 96], sizes = [2, 32], strides = [1, 1]} : vector<2x128xf32> to vector<2x32xf32>
    %126 = arith.mulf %123, %104 : vector<2x32xf32>
    %127 = arith.mulf %122, %124 : vector<2x32xf32>
    %128 = arith.addf %126, %127 : vector<2x32xf32>
    %129 = math.tanh %128 : vector<2x32xf32>
    %130 = arith.mulf %125, %129 : vector<2x32xf32>
    %c0_36 = arith.constant 0 : index
    %c128_37 = arith.constant 128 : index
    %131 = vector.load %arg5[%c0_36, %c128_37] : memref<2x256xf32, #tpu.memory_space<vmem>>, vector<2x32xf32>
    tpu.vector_store %arg5[%c0_36, %c128_37], %130 {strides = array<i32>} : memref<2x256xf32, #tpu.memory_space<vmem>>, vector<2x32xf32>,
    %c0_38 = arith.constant 0 : index
    %c640 = arith.constant 640 : index
    %132 = vector.load %arg1[%c0_38, %c640] : memref<2x1024xbf16, #tpu.memory_space<vmem>>, vector<2x128xbf16>
    %133 = arith.extf %132 : vector<2x128xbf16> to vector<2x128xf32>
    %134 = arith.truncf %130 : vector<2x32xf32> to vector<2x32xbf16>
    %cst_39 = arith.constant dense<0.000000e+00> : vector<2x128xf32>
    %135 = tpu.matmul %134, %3, %cst_39 {dimension_numbers = #tpu.dot_dimension_numbers<[1], [0], [0], [1], [0, 0, 1, 1], [], []>} : vector<2x32xbf16>, vector<32x128xbf16>, vector<2x128xf32> -> vector<2x128xf32>
    %136 = arith.addf %133, %135 : vector<2x128xf32>
    %cst_40 = arith.constant 5.000000e-01 : f32
    %137 = vector.broadcast %cst_40 : f32 to vector<2x128xf32>
    %138 = arith.mulf %137, %136 : vector<2x128xf32>
    %139 = arith.select %9, %136, %138 : vector<2x128xi1>, vector<2x128xf32>
    %140 = math.tanh %139 : vector<2x128xf32>
    %cst_41 = arith.constant 5.000000e-01 : f32
    %141 = vector.broadcast %cst_41 : f32 to vector<2x128xf32>
    %142 = arith.mulf %141, %140 : vector<2x128xf32>
    %cst_42 = arith.constant 5.000000e-01 : f32
    %143 = vector.broadcast %cst_42 : f32 to vector<2x128xf32>
    %144 = arith.addf %142, %143 : vector<2x128xf32>
    %145 = arith.select %9, %140, %144 : vector<2x128xi1>, vector<2x128xf32>
    %146 = vector.extract_strided_slice %145 {offsets = [0, 0], sizes = [2, 32], strides = [1, 1]} : vector<2x128xf32> to vector<2x32xf32>
    %147 = vector.extract_strided_slice %145 {offsets = [0, 32], sizes = [2, 32], strides = [1, 1]} : vector<2x128xf32> to vector<2x32xf32>
    %148 = vector.extract_strided_slice %145 {offsets = [0, 64], sizes = [2, 32], strides = [1, 1]} : vector<2x128xf32> to vector<2x32xf32>
    %149 = vector.extract_strided_slice %145 {offsets = [0, 96], sizes = [2, 32], strides = [1, 1]} : vector<2x128xf32> to vector<2x32xf32>
    %150 = arith.mulf %147, %128 : vector<2x32xf32>
    %151 = arith.mulf %146, %148 : vector<2x32xf32>
    %152 = arith.addf %150, %151 : vector<2x32xf32>
    %153 = math.tanh %152 : vector<2x32xf32>
    %154 = arith.mulf %149, %153 : vector<2x32xf32>
    %c0_43 = arith.constant 0 : index
    %c160 = arith.constant 160 : index
    %155 = vector.load %arg5[%c0_43, %c160] : memref<2x256xf32, #tpu.memory_space<vmem>>, vector<2x32xf32>
    tpu.vector_store %arg5[%c0_43, %c160], %154 {strides = array<i32>} : memref<2x256xf32, #tpu.memory_space<vmem>>, vector<2x32xf32>,
    %c0_44 = arith.constant 0 : index
    %c768 = arith.constant 768 : index
    %156 = vector.load %arg1[%c0_44, %c768] : memref<2x1024xbf16, #tpu.memory_space<vmem>>, vector<2x128xbf16>
    %157 = arith.extf %156 : vector<2x128xbf16> to vector<2x128xf32>
    %158 = arith.truncf %154 : vector<2x32xf32> to vector<2x32xbf16>
    %cst_45 = arith.constant dense<0.000000e+00> : vector<2x128xf32>
    %159 = tpu.matmul %158, %3, %cst_45 {dimension_numbers = #tpu.dot_dimension_numbers<[1], [0], [0], [1], [0, 0, 1, 1], [], []>} : vector<2x32xbf16>, vector<32x128xbf16>, vector<2x128xf32> -> vector<2x128xf32>
    %160 = arith.addf %157, %159 : vector<2x128xf32>
    %cst_46 = arith.constant 5.000000e-01 : f32
    %161 = vector.broadcast %cst_46 : f32 to vector<2x128xf32>
    %162 = arith.mulf %161, %160 : vector<2x128xf32>
    %163 = arith.select %9, %160, %162 : vector<2x128xi1>, vector<2x128xf32>
    %164 = math.tanh %163 : vector<2x128xf32>
    %cst_47 = arith.constant 5.000000e-01 : f32
    %165 = vector.broadcast %cst_47 : f32 to vector<2x128xf32>
    %166 = arith.mulf %165, %164 : vector<2x128xf32>
    %cst_48 = arith.constant 5.000000e-01 : f32
    %167 = vector.broadcast %cst_48 : f32 to vector<2x128xf32>
    %168 = arith.addf %166, %167 : vector<2x128xf32>
    %169 = arith.select %9, %164, %168 : vector<2x128xi1>, vector<2x128xf32>
    %170 = vector.extract_strided_slice %169 {offsets = [0, 0], sizes = [2, 32], strides = [1, 1]} : vector<2x128xf32> to vector<2x32xf32>
    %171 = vector.extract_strided_slice %169 {offsets = [0, 32], sizes = [2, 32], strides = [1, 1]} : vector<2x128xf32> to vector<2x32xf32>
    %172 = vector.extract_strided_slice %169 {offsets = [0, 64], sizes = [2, 32], strides = [1, 1]} : vector<2x128xf32> to vector<2x32xf32>
    %173 = vector.extract_strided_slice %169 {offsets = [0, 96], sizes = [2, 32], strides = [1, 1]} : vector<2x128xf32> to vector<2x32xf32>
    %174 = arith.mulf %171, %152 : vector<2x32xf32>
    %175 = arith.mulf %170, %172 : vector<2x32xf32>
    %176 = arith.addf %174, %175 : vector<2x32xf32>
    %177 = math.tanh %176 : vector<2x32xf32>
    %178 = arith.mulf %173, %177 : vector<2x32xf32>
    %c0_49 = arith.constant 0 : index
    %c192 = arith.constant 192 : index
    %179 = vector.load %arg5[%c0_49, %c192] : memref<2x256xf32, #tpu.memory_space<vmem>>, vector<2x32xf32>
    tpu.vector_store %arg5[%c0_49, %c192], %178 {strides = array<i32>} : memref<2x256xf32, #tpu.memory_space<vmem>>, vector<2x32xf32>,
    %c0_50 = arith.constant 0 : index
    %c896 = arith.constant 896 : index
    %180 = vector.load %arg1[%c0_50, %c896] : memref<2x1024xbf16, #tpu.memory_space<vmem>>, vector<2x128xbf16>
    %181 = arith.extf %180 : vector<2x128xbf16> to vector<2x128xf32>
    %182 = arith.truncf %178 : vector<2x32xf32> to vector<2x32xbf16>
    %cst_51 = arith.constant dense<0.000000e+00> : vector<2x128xf32>
    %183 = tpu.matmul %182, %3, %cst_51 {dimension_numbers = #tpu.dot_dimension_numbers<[1], [0], [0], [1], [0, 0, 1, 1], [], []>} : vector<2x32xbf16>, vector<32x128xbf16>, vector<2x128xf32> -> vector<2x128xf32>
    %184 = arith.addf %181, %183 : vector<2x128xf32>
    %cst_52 = arith.constant 5.000000e-01 : f32
    %185 = vector.broadcast %cst_52 : f32 to vector<2x128xf32>
    %186 = arith.mulf %185, %184 : vector<2x128xf32>
    %187 = arith.select %9, %184, %186 : vector<2x128xi1>, vector<2x128xf32>
    %188 = math.tanh %187 : vector<2x128xf32>
    %cst_53 = arith.constant 5.000000e-01 : f32
    %189 = vector.broadcast %cst_53 : f32 to vector<2x128xf32>
    %190 = arith.mulf %189, %188 : vector<2x128xf32>
    %cst_54 = arith.constant 5.000000e-01 : f32
    %191 = vector.broadcast %cst_54 : f32 to vector<2x128xf32>
    %192 = arith.addf %190, %191 : vector<2x128xf32>
    %193 = arith.select %9, %188, %192 : vector<2x128xi1>, vector<2x128xf32>
    %194 = vector.extract_strided_slice %193 {offsets = [0, 0], sizes = [2, 32], strides = [1, 1]} : vector<2x128xf32> to vector<2x32xf32>
    %195 = vector.extract_strided_slice %193 {offsets = [0, 32], sizes = [2, 32], strides = [1, 1]} : vector<2x128xf32> to vector<2x32xf32>
    %196 = vector.extract_strided_slice %193 {offsets = [0, 64], sizes = [2, 32], strides = [1, 1]} : vector<2x128xf32> to vector<2x32xf32>
    %197 = vector.extract_strided_slice %193 {offsets = [0, 96], sizes = [2, 32], strides = [1, 1]} : vector<2x128xf32> to vector<2x32xf32>
    %198 = arith.mulf %195, %176 : vector<2x32xf32>
    %199 = arith.mulf %194, %196 : vector<2x32xf32>
    %200 = arith.addf %198, %199 : vector<2x32xf32>
    %201 = math.tanh %200 : vector<2x32xf32>
    %202 = arith.mulf %197, %201 : vector<2x32xf32>
    %c0_55 = arith.constant 0 : index
    %c224 = arith.constant 224 : index
    %203 = vector.load %arg5[%c0_55, %c224] : memref<2x256xf32, #tpu.memory_space<vmem>>, vector<2x32xf32>
    tpu.vector_store %arg5[%c0_55, %c224], %202 {strides = array<i32>} : memref<2x256xf32, #tpu.memory_space<vmem>>, vector<2x32xf32>,
    %c0_56 = arith.constant 0 : index
    %c0_57 = arith.constant 0 : index
    %204 = vector.load %arg8[%c0_56, %c0_57] : memref<2x32xf32, #tpu.memory_space<vmem>>, vector<2x32xf32>
    tpu.vector_store %arg8[%c0_56, %c0_57], %202 {strides = array<i32>} : memref<2x32xf32, #tpu.memory_space<vmem>>, vector<2x32xf32>,
    %c0_58 = arith.constant 0 : index
    %c0_59 = arith.constant 0 : index
    %205 = vector.load %arg9[%c0_58, %c0_59] : memref<2x32xf32, #tpu.memory_space<vmem>>, vector<2x32xf32>
    tpu.vector_store %arg9[%c0_58, %c0_59], %200 {strides = array<i32>} : memref<2x32xf32, #tpu.memory_space<vmem>>, vector<2x32xf32>,
    %c0_60 = arith.constant 0 : index
    %c0_61 = arith.constant 0 : index
    %206 = vector.load %arg6[%c0_60, %c0_61] : memref<2x32xf32, #tpu.memory_space<vmem>>, vector<2x32xf32>
    tpu.vector_store %arg6[%c0_60, %c0_61], %202 {strides = array<i32>} : memref<2x32xf32, #tpu.memory_space<vmem>>, vector<2x32xf32>,
    %c0_62 = arith.constant 0 : index
    %c0_63 = arith.constant 0 : index
    %207 = vector.load %arg7[%c0_62, %c0_63] : memref<2x32xf32, #tpu.memory_space<vmem>>, vector<2x32xf32>
    tpu.vector_store %arg7[%c0_62, %c0_63], %200 {strides = array<i32>} : memref<2x32xf32, #tpu.memory_space<vmem>>, vector<2x32xf32>,
    return
  }
  func.func @transform_0(%arg0: i32) -> (i32, i32) {
    %c0_i32 = arith.constant 0 : i32
    %c0_i32_0 = arith.constant 0 : i32
    return %c0_i32, %arg0 : i32, i32
  }
  func.func @transform_1(%arg0: i32) -> (i32, i32) {
    %c0_i32 = arith.constant 0 : i32
    %c0_i32_0 = arith.constant 0 : i32
    %c0_i32_1 = arith.constant 0 : i32
    return %c0_i32, %c0_i32_0 : i32, i32
  }
  func.func @transform_2(%arg0: i32) -> (i32, i32) {
    %c0_i32 = arith.constant 0 : i32
    %c0_i32_0 = arith.constant 0 : i32
    %c0_i32_1 = arith.constant 0 : i32
    return %c0_i32, %c0_i32_0 : i32, i32
  }
  func.func @transform_3(%arg0: i32) -> (i32, i32) {
    %c0_i32 = arith.constant 0 : i32
    %c0_i32_0 = arith.constant 0 : i32
    %c0_i32_1 = arith.constant 0 : i32
    return %c0_i32, %c0_i32_0 : i32, i32
  }
  func.func @transform_4(%arg0: i32) -> (i32, i32) {
    %c0_i32 = arith.constant 0 : i32
    %c0_i32_0 = arith.constant 0 : i32
    return %c0_i32, %arg0 : i32, i32
  }
  func.func @transform_5(%arg0: i32) -> (i32, i32) {
    %c0_i32 = arith.constant 0 : i32
    %c0_i32_0 = arith.constant 0 : i32
    %c0_i32_1 = arith.constant 0 : i32
    return %c0_i32, %c0_i32_0 : i32, i32
  }
  func.func @transform_6(%arg0: i32) -> (i32, i32) {
    %c0_i32 = arith.constant 0 : i32
    %c0_i32_0 = arith.constant 0 : i32
    %c0_i32_1 = arith.constant 0 : i32
    return %c0_i32, %c0_i32_0 : i32, i32
  }
}

</mosaic_0001>

<llo_original>
// kernel: decoder_forward.1
$region0: #{decoder_forward.1}
  #allocation0 [shape = 'u32[]', space=smem, size = 0x4, offset = 0x4, fixed_abs, tag = 'smem constant byte address 0x4 - core index']
  #allocation1 [shape = 'u32[144,128]{1,0:T(1,128)}', space=vmem, size = 0x12000, scoped, tag = 'internal scratch']
  #allocation2 [shape = 'f32[2,32]{1,0:T(2,128)}', space=vmem, size = 0x400, scoped, tag = 'scratch operand']
  #allocation3 [shape = 'f32[2,32]{1,0:T(2,128)}', space=vmem, size = 0x400, scoped, tag = 'scratch operand']
  %s0 = inlined_call_operand.vmem [shape: bf16[2,1024], index: 0, kind: input, shape index: {}]
  %s1 = inlined_call_operand.vmem [shape: bf16[32,128], index: 1, kind: input, shape index: {}]
  %s2 = inlined_call_operand.vmem [shape: f32[2,32], index: 2, kind: input, shape index: {}]
  %s3 = inlined_call_operand.vmem [shape: f32[2,32], index: 3, kind: input, shape index: {}]
  %s4 = inlined_call_operand.vmem [shape: f32[2,256], index: 4, kind: output, shape index: {0}]
  %s5 = inlined_call_operand.hbm [shape: f32[2,32], index: 5, kind: output, shape index: {1}]
  %s6 = inlined_call_operand.hbm [shape: f32[2,32], index: 6, kind: output, shape index: {2}]
  %7 = xla_tuple %s4, %s5, %s6
  %s8 = sld [smem:[#allocation0]]
  $region46: #{decoder_forward.1} parent=0
    _
  %s10 = ssub.s32 1, %s8
  %s11 = scalar_select 0, %s10, %s8
  $region1: #{decoder_forward.1} parent=0
    #allocation4 [shape = 'u8[1024]{0}', space=vmem, size = 0x400, scoped, tag = 'output window, operand 1, single buffered']
    #allocation5 [shape = 's32[1]{0}', space=sflag, size = 0x4, scoped, tag = 'scoped memory for decoder_forward.1']
    #allocation6 [shape = 'u8[1024]{0}', space=vmem, size = 0x400, scoped, tag = 'output window, operand 2, single buffered']
    #allocation7 [shape = 's32[1]{0}', space=sflag, size = 0x4, scoped, tag = 'scoped memory for decoder_forward.1']
    %12 = vsyncpa [#allocation5], 0
    %13 = vsyncpa [#allocation7], 0
    // Predicated region
    $region2: #{decoder_forward.1} parent=1 // pred_check
      _
    $region3: #{decoder_forward.1} parent=1 // pred_check_branch
      %15 = sbr.rel (0) target = $region5
    $region4: #{decoder_forward.1} parent=1 // pred_region
      _
    $region5: #{decoder_forward.1} parent=1 // pred_fallthru
      _
    // Predicated region
    $region6: #{decoder_forward.1} parent=1 // pred_check
      _
    $region7: #{decoder_forward.1} parent=1 // pred_check_branch
      %17 = sbr.rel (0) target = $region9
    $region8: #{decoder_forward.1} parent=1 // pred_region
      _
    $region9: #{decoder_forward.1} parent=1 // pred_fallthru
      _
    // Predicated region
    $region10: #{decoder_forward.1} parent=1 // pred_check
      _
    $region11: #{decoder_forward.1} parent=1 // pred_check_branch
      %19 = sbr.rel (0) target = $region13
    $region12: #{decoder_forward.1} parent=1 // pred_region
      _
    $region13: #{decoder_forward.1} parent=1 // pred_fallthru
      _
    // Predicated region
    $region14: #{decoder_forward.1} parent=1 // pred_check
      _
    $region15: #{decoder_forward.1} parent=1 // pred_check_branch
      %21 = sbr.rel (0) target = $region17
    $region16: #{decoder_forward.1} parent=1 // pred_region
      _
    $region17: #{decoder_forward.1} parent=1 // pred_fallthru
      _
    %p23 = scmp.eq.s32.totalorder 0, 0
    // Predicated region
    $region18: #{decoder_forward.1} parent=1 // pred_check
      %p24 = pneg %p23
    $region19: #{decoder_forward.1} parent=1 // pred_check_branch
      %26 = sbr.rel (%p24) target = $region21
    $region20: #{decoder_forward.1} parent=1 // pred_region
      %v27 = vld [vmem:[%s2] sm:$0x3]
      %vm28 = vcmask 254976
      %29 = vst.msk [vmem:[#allocation2] sm:$0x3] %vm28, %v27
      %v30 = vld [vmem:[%s3] sm:$0x3]
      %31 = vst.msk [vmem:[#allocation3] sm:$0x3] %vm28, %v30
    $region21: #{decoder_forward.1} parent=1 // pred_fallthru
      _
    %v32 = vld [vmem:[%s1] sm:$0xf]
    %v33 = vld [vmem:[%s1 + $0x4] sm:$0xf]
    %v34 = vld [vmem:[%s1 + $0x8] sm:$0xf]
    %v35 = vld [vmem:[%s1 + $0xc] sm:$0xf]
    %v36 = vlaneseq
    %v37 = vand.u32 %v36, 127
    %vm38 = vcmp.ge.s32.totalorder %v37, 64
    %vm39 = vcmp.lt.s32.totalorder %v37, 96
    %vm40 = vmand %vm38, %vm39
    %v41 = vld [vmem:[#allocation2] sm:$0x3]
    %v42 = vld [vmem:[#allocation3] sm:$0x3]
    %v43 = vld [vmem:[%s0] sm:$0x1]
    %v44 = vunpack.c.l.bf16 %v43
    %v45 = vpack.c.bf16 %v41, %v41
    %v50 = vunpack.c.l.b16 %v32
    %v51 = vunpack.c.l.b16 %v33
    %v52 = vunpack.c.l.b16 %v34
    %v53 = vunpack.c.l.b16 %v35
    %v54 = vpack.c.b16 %v51, %v50
    %v55 = vpack.c.b16 %v53, %v52
    %vm58 = vcmask 261120
    %v60 = vsel %vm58, %v45, 0
    %62 = vmatprep.subr.bf16.mxu0 0
    %63 = vmatpush1.bf16.msra.mxu0 0
    %64 = vmatprep.subr.bf16.mxu0 0
    %65 = vmatpush1.bf16.msra.mxu0 0
    %66 = vmatprep.subr.bf16.mxu0 0
    %67 = vmatpush1.bf16.msra.mxu0 0
    %68 = vmatprep.subr.bf16.mxu0 0
    %69 = vmatpush1.bf16.msra.mxu0 0
    %70 = vmatprep.subr.bf16.mxu0 0
    %71 = vmatpush1.bf16.msra.mxu0 0
    %72 = vmatprep.subr.bf16.mxu0 0
    %73 = vmatpush1.bf16.msra.mxu0 0
    %74 = vmatprep.subr.bf16.mxu0 0
    %75 = vmatpush1.bf16.msra.mxu0 %v55
    %76 = vmatprep.subr.bf16.mxu0 0
    %77 = vmatpush1.bf16.msra.mxu0 %v54
    %78 = vmatprep.subr.bf16.mxu0 0
    %79 = vmatpush2.bf16.msra.mxu0 0
    %80 = vmatprep.subr.bf16.mxu0 0
    %81 = vmatpush2.bf16.msra.mxu0 0
    %82 = vmatprep.subr.bf16.mxu0 0
    %83 = vmatpush2.bf16.msra.mxu0 0
    %84 = vmatprep.subr.bf16.mxu0 0
    %85 = vmatpush2.bf16.msra.mxu0 0
    %86 = vmatprep.subr.bf16.mxu0 0
    %87 = vmatpush2.bf16.msra.mxu0 0
    %88 = vmatprep.subr.bf16.mxu0 0
    %89 = vmatpush2.bf16.msra.mxu0 0
    %90 = vmatprep.subr.bf16.mxu0 0
    %91 = vmatpush2.bf16.msra.mxu0 0
    %92 = vmatprep.subr.bf16.mxu0 0
    %93 = vmatpush2.bf16.msra.mxu0 0
    %94 = vmatprep.mubr.bf16.mxu0 0
    %95 = vmatmul.mubr.bf16.gmra.mxu0 %v60
    %v96 = vpop.f32.mrf.mxu0
    %v97 = vadd.f32 0.0, %v96
    %v98 = vpop.f32.mrf.mxu0
    %v99 = vpop.f32.mrf.mxu0
    %v100 = vpop.f32.mrf.mxu0
    %101 = vdwg.mxu0
    %v102 = vadd.f32 %v44, %v97
    %v103 = vmul.f32 %v102, 0.5
    %v104 = vsel %vm40, %v102, %v103
    %v105 = vtanh.pop %v104
    %v106 = vmul.f32 %v105, 0.5
    %v107 = vadd.f32 %v106, 0.5
    %v108 = vsel %vm40, %v105, %v107
    %110 = vrot.lane.b32.xlu0 %v42, 32
    %v111 = vpop.permute.xlu0 %110
    %v113 = vmul.f32 %v108, %v111
    %115 = vrot.lane.b32.xlu0 %v108, 64
    %v116 = vpop.permute.xlu0 %115
    %v118 = vmul.f32 %v108, %v116
    %120 = vrot.lane.b32.xlu0 %v118, 32
    %v121 = vpop.permute.xlu0 %120
    %v123 = vadd.f32 %v113, %v121
    %v124 = vtanh.pop %v123
    %126 = vrot.lane.b32.xlu0 %v124, 64
    %v127 = vpop.permute.xlu0 %126
    %v129 = vmul.f32 %v108, %v127
    %v132 = vunpack.c.l.s4 1983009808
    %v133 = vunpack.c.0.s8 %v132
    %v134 = vlaneseq
    %v135 = vshrl.u32 %v134, 7
    %v136 = vsub.s32 %v133, %v135
    %v137 = vrot.slane %v129, %v136
    %138 = vrot.lane.b32.xlu0 %v137, 32
    %v139 = vpop.permute.xlu0 %138
    %vm141 = vcmask 254976
    %142 = vst.msk [vmem:[%s4] sm:$0x3] %vm141, %v139
    %v143 = vld [vmem:[%s0 + $0x1] sm:$0x1]
    %v144 = vunpack.c.l.bf16 %v143
    %v145 = vpack.c.bf16 %v129, %v129
    %147 = vrot.lane.b32.xlu0 %v145, 32
    %v148 = vpop.permute.xlu0 %147
    %v150 = vsel %vm58, %v148, 0
    %152 = vmatprep.subr.bf16.mxu0 0
    %153 = vmatpush1.bf16.msra.mxu0 0
    %154 = vmatprep.subr.bf16.mxu0 0
    %155 = vmatpush1.bf16.msra.mxu0 0
    %156 = vmatprep.subr.bf16.mxu0 0
    %157 = vmatpush1.bf16.msra.mxu0 0
    %158 = vmatprep.subr.bf16.mxu0 0
    %159 = vmatpush1.bf16.msra.mxu0 0
    %160 = vmatprep.subr.bf16.mxu0 0
    %161 = vmatpush1.bf16.msra.mxu0 0
    %162 = vmatprep.subr.bf16.mxu0 0
    %163 = vmatpush1.bf16.msra.mxu0 0
    %164 = vmatprep.subr.bf16.mxu0 0
    %165 = vmatpush1.bf16.msra.mxu0 %v55
    %166 = vmatprep.subr.bf16.mxu0 0
    %167 = vmatpush1.bf16.msra.mxu0 %v54
    %168 = vmatprep.subr.bf16.mxu0 0
    %169 = vmatpush2.bf16.msra.mxu0 0
    %170 = vmatprep.subr.bf16.mxu0 0
    %171 = vmatpush2.bf16.msra.mxu0 0
    %172 = vmatprep.subr.bf16.mxu0 0
    %173 = vmatpush2.bf16.msra.mxu0 0
    %174 = vmatprep.subr.bf16.mxu0 0
    %175 = vmatpush2.bf16.msra.mxu0 0
    %176 = vmatprep.subr.bf16.mxu0 0
    %177 = vmatpush2.bf16.msra.mxu0 0
    %178 = vmatprep.subr.bf16.mxu0 0
    %179 = vmatpush2.bf16.msra.mxu0 0
    %180 = vmatprep.subr.bf16.mxu0 0
    %181 = vmatpush2.bf16.msra.mxu0 0
    %182 = vmatprep.subr.bf16.mxu0 0
    %183 = vmatpush2.bf16.msra.mxu0 0
    %184 = vmatprep.mubr.bf16.mxu0 0
    %185 = vmatmul.mubr.bf16.gmra.mxu0 %v150
    %v186 = vpop.f32.mrf.mxu0
    %v187 = vadd.f32 0.0, %v186
    %v188 = vpop.f32.mrf.mxu0
    %v189 = vpop.f32.mrf.mxu0
    %v190 = vpop.f32.mrf.mxu0
    %191 = vdwg.mxu0
    %v192 = vadd.f32 %v144, %v187
    %v193 = vmul.f32 %v192, 0.5
    %v194 = vsel %vm40, %v192, %v193
    %v195 = vtanh.pop %v194
    %v196 = vmul.f32 %v195, 0.5
    %v197 = vadd.f32 %v196, 0.5
    %v198 = vsel %vm40, %v195, %v197
    %v199 = vmul.f32 %v198, %v123
    %201 = vrot.lane.b32.xlu0 %v198, 64
    %v202 = vpop.permute.xlu0 %201
    %v204 = vmul.f32 %v198, %v202
    %206 = vrot.lane.b32.xlu0 %v204, 32
    %v207 = vpop.permute.xlu0 %206
    %v209 = vadd.f32 %v199, %v207
    %v210 = vtanh.pop %v209
    %212 = vrot.lane.b32.xlu0 %v210, 64
    %v213 = vpop.permute.xlu0 %212
    %v215 = vmul.f32 %v198, %v213
    %v218 = vunpack.c.l.s4 1983009808
    %v219 = vunpack.c.0.s8 %v218
    %v220 = vlaneseq
    %v221 = vshrl.u32 %v220, 7
    %v222 = vsub.s32 %v219, %v221
    %v223 = vrot.slane %v215, %v222
    %224 = vrot.lane.b32.xlu0 %v223, 64
    %v225 = vpop.permute.xlu0 %224
    %vm227 = vcmask 517376
    %228 = vst.msk [vmem:[%s4] sm:$0x3] %vm227, %v225
    %v229 = vld [vmem:[%s0 + $0x2] sm:$0x1]
    %v230 = vunpack.c.l.bf16 %v229
    %v231 = vpack.c.bf16 %v215, %v215
    %233 = vrot.lane.b32.xlu0 %v231, 32
    %v234 = vpop.permute.xlu0 %233
    %v236 = vsel %vm58, %v234, 0
    %238 = vmatprep.subr.bf16.mxu0 0
    %239 = vmatpush1.bf16.msra.mxu0 0
    %240 = vmatprep.subr.bf16.mxu0 0
    %241 = vmatpush1.bf16.msra.mxu0 0
    %242 = vmatprep.subr.bf16.mxu0 0
    %243 = vmatpush1.bf16.msra.mxu0 0
    %244 = vmatprep.subr.bf16.mxu0 0
    %245 = vmatpush1.bf16.msra.mxu0 0
    %246 = vmatprep.subr.bf16.mxu0 0
    %247 = vmatpush1.bf16.msra.mxu0 0
    %248 = vmatprep.subr.bf16.mxu0 0
    %249 = vmatpush1.bf16.msra.mxu0 0
    %250 = vmatprep.subr.bf16.mxu0 0
    %251 = vmatpush1.bf16.msra.mxu0 %v55
    %252 = vmatprep.subr.bf16.mxu0 0
    %253 = vmatpush1.bf16.msra.mxu0 %v54
    %254 = vmatprep.subr.bf16.mxu0 0
    %255 = vmatpush2.bf16.msra.mxu0 0
    %256 = vmatprep.subr.bf16.mxu0 0
    %257 = vmatpush2.bf16.msra.mxu0 0
    %258 = vmatprep.subr.bf16.mxu0 0
    %259 = vmatpush2.bf16.msra.mxu0 0
    %260 = vmatprep.subr.bf16.mxu0 0
    %261 = vmatpush2.bf16.msra.mxu0 0
    %262 = vmatprep.subr.bf16.mxu0 0
    %263 = vmatpush2.bf16.msra.mxu0 0
    %264 = vmatprep.subr.bf16.mxu0 0
    %265 = vmatpush2.bf16.msra.mxu0 0
    %266 = vmatprep.subr.bf16.mxu0 0
    %267 = vmatpush2.bf16.msra.mxu0 0
    %268 = vmatprep.subr.bf16.mxu0 0
    %269 = vmatpush2.bf16.msra.mxu0 0
    %270 = vmatprep.mubr.bf16.mxu0 0
    %271 = vmatmul.mubr.bf16.gmra.mxu0 %v236
    %v272 = vpop.f32.mrf.mxu0
    %v273 = vadd.f32 0.0, %v272
    %v274 = vpop.f32.mrf.mxu0
    %v275 = vpop.f32.mrf.mxu0
    %v276 = vpop.f32.mrf.mxu0
    %277 = vdwg.mxu0
    %v278 = vadd.f32 %v230, %v273
    %v279 = vmul.f32 %v278, 0.5
    %v280 = vsel %vm40, %v278, %v279
    %v281 = vtanh.pop %v280
    %v282 = vmul.f32 %v281, 0.5
    %v283 = vadd.f32 %v282, 0.5
    %v284 = vsel %vm40, %v281, %v283
    %v285 = vmul.f32 %v284, %v209
    %287 = vrot.lane.b32.xlu0 %v284, 64
    %v288 = vpop.permute.xlu0 %287
    %v290 = vmul.f32 %v284, %v288
    %292 = vrot.lane.b32.xlu0 %v290, 32
    %v293 = vpop.permute.xlu0 %292
    %v295 = vadd.f32 %v285, %v293
    %v296 = vtanh.pop %v295
    %298 = vrot.lane.b32.xlu0 %v296, 64
    %v299 = vpop.permute.xlu0 %298
    %v301 = vmul.f32 %v284, %v299
    %v304 = vunpack.c.l.s4 1983009808
    %v305 = vunpack.c.0.s8 %v304
    %v306 = vlaneseq
    %v307 = vshrl.u32 %v306, 7
    %v308 = vsub.s32 %v305, %v307
    %v309 = vrot.slane %v301, %v308
    %310 = vrot.lane.b32.xlu0 %v309, 96
    %v311 = vpop.permute.xlu0 %310
    %vm313 = vcmask 779776
    %314 = vst.msk [vmem:[%s4] sm:$0x3] %vm313, %v311
    %v315 = vld [vmem:[%s0 + $0x3] sm:$0x1]
    %v316 = vunpack.c.l.bf16 %v315
    %v317 = vpack.c.bf16 %v301, %v301
    %319 = vrot.lane.b32.xlu0 %v317, 32
    %v320 = vpop.permute.xlu0 %319
    %v322 = vsel %vm58, %v320, 0
    %324 = vmatprep.subr.bf16.mxu0 0
    %325 = vmatpush1.bf16.msra.mxu0 0
    %326 = vmatprep.subr.bf16.mxu0 0
    %327 = vmatpush1.bf16.msra.mxu0 0
    %328 = vmatprep.subr.bf16.mxu0 0
    %329 = vmatpush1.bf16.msra.mxu0 0
    %330 = vmatprep.subr.bf16.mxu0 0
    %331 = vmatpush1.bf16.msra.mxu0 0
    %332 = vmatprep.subr.bf16.mxu0 0
    %333 = vmatpush1.bf16.msra.mxu0 0
    %334 = vmatprep.subr.bf16.mxu0 0
    %335 = vmatpush1.bf16.msra.mxu0 0
    %336 = vmatprep.subr.bf16.mxu0 0
    %337 = vmatpush1.bf16.msra.mxu0 %v55
    %338 = vmatprep.subr.bf16.mxu0 0
    %339 = vmatpush1.bf16.msra.mxu0 %v54
    %340 = vmatprep.subr.bf16.mxu0 0
    %341 = vmatpush2.bf16.msra.mxu0 0
    %342 = vmatprep.subr.bf16.mxu0 0
    %343 = vmatpush2.bf16.msra.mxu0 0
    %344 = vmatprep.subr.bf16.mxu0 0
    %345 = vmatpush2.bf16.msra.mxu0 0
    %346 = vmatprep.subr.bf16.mxu0 0
    %347 = vmatpush2.bf16.msra.mxu0 0
    %348 = vmatprep.subr.bf16.mxu0 0
    %349 = vmatpush2.bf16.msra.mxu0 0
    %350 = vmatprep.subr.bf16.mxu0 0
    %351 = vmatpush2.bf16.msra.mxu0 0
    %352 = vmatprep.subr.bf16.mxu0 0
    %353 = vmatpush2.bf16.msra.mxu0 0
    %354 = vmatprep.subr.bf16.mxu0 0
    %355 = vmatpush2.bf16.msra.mxu0 0
    %356 = vmatprep.mubr.bf16.mxu0 0
    %357 = vmatmul.mubr.bf16.gmra.mxu0 %v322
    %v358 = vpop.f32.mrf.mxu0
    %v359 = vadd.f32 0.0, %v358
    %v360 = vpop.f32.mrf.mxu0
    %v361 = vpop.f32.mrf.mxu0
    %v362 = vpop.f32.mrf.mxu0
    %363 = vdwg.mxu0
    %v364 = vadd.f32 %v316, %v359
    %v365 = vmul.f32 %v364, 0.5
    %v366 = vsel %vm40, %v364, %v365
    %v367 = vtanh.pop %v366
    %v368 = vmul.f32 %v367, 0.5
    %v369 = vadd.f32 %v368, 0.5
    %v370 = vsel %vm40, %v367, %v369
    %v371 = vmul.f32 %v370, %v295
    %373 = vrot.lane.b32.xlu0 %v370, 64
    %v374 = vpop.permute.xlu0 %373
    %v376 = vmul.f32 %v370, %v374
    %378 = vrot.lane.b32.xlu0 %v376, 32
    %v379 = vpop.permute.xlu0 %378
    %v381 = vadd.f32 %v371, %v379
    %v382 = vtanh.pop %v381
    %384 = vrot.lane.b32.xlu0 %v382, 64
    %v385 = vpop.permute.xlu0 %384
    %v387 = vmul.f32 %v370, %v385
    %vm388 = vcmask 1042176
    %389 = vst.msk [vmem:[%s4] sm:$0x3] %vm388, %v387
    %v390 = vld [vmem:[%s0 + $0x4] sm:$0x1]
    %v391 = vunpack.c.l.bf16 %v390
    %v392 = vpack.c.bf16 %v387, %v387
    %394 = vrot.lane.b32.xlu0 %v392, 32
    %v395 = vpop.permute.xlu0 %394
    %v397 = vsel %vm58, %v395, 0
    %399 = vmatprep.subr.bf16.mxu0 0
    %400 = vmatpush1.bf16.msra.mxu0 0
    %401 = vmatprep.subr.bf16.mxu0 0
    %402 = vmatpush1.bf16.msra.mxu0 0
    %403 = vmatprep.subr.bf16.mxu0 0
    %404 = vmatpush1.bf16.msra.mxu0 0
    %405 = vmatprep.subr.bf16.mxu0 0
    %406 = vmatpush1.bf16.msra.mxu0 0
    %407 = vmatprep.subr.bf16.mxu0 0
    %408 = vmatpush1.bf16.msra.mxu0 0
    %409 = vmatprep.subr.bf16.mxu0 0
    %410 = vmatpush1.bf16.msra.mxu0 0
    %411 = vmatprep.subr.bf16.mxu0 0
    %412 = vmatpush1.bf16.msra.mxu0 %v55
    %413 = vmatprep.subr.bf16.mxu0 0
    %414 = vmatpush1.bf16.msra.mxu0 %v54
    %415 = vmatprep.subr.bf16.mxu0 0
    %416 = vmatpush2.bf16.msra.mxu0 0
    %417 = vmatprep.subr.bf16.mxu0 0
    %418 = vmatpush2.bf16.msra.mxu0 0
    %419 = vmatprep.subr.bf16.mxu0 0
    %420 = vmatpush2.bf16.msra.mxu0 0
    %421 = vmatprep.subr.bf16.mxu0 0
    %422 = vmatpush2.bf16.msra.mxu0 0
    %423 = vmatprep.subr.bf16.mxu0 0
    %424 = vmatpush2.bf16.msra.mxu0 0
    %425 = vmatprep.subr.bf16.mxu0 0
    %426 = vmatpush2.bf16.msra.mxu0 0
    %427 = vmatprep.subr.bf16.mxu0 0
    %428 = vmatpush2.bf16.msra.mxu0 0
    %429 = vmatprep.subr.bf16.mxu0 0
    %430 = vmatpush2.bf16.msra.mxu0 0
    %431 = vmatprep.mubr.bf16.mxu0 0
    %432 = vmatmul.mubr.bf16.gmra.mxu0 %v397
    %v433 = vpop.f32.mrf.mxu0
    %v434 = vadd.f32 0.0, %v433
    %v435 = vpop.f32.mrf.mxu0
    %v436 = vpop.f32.mrf.mxu0
    %v437 = vpop.f32.mrf.mxu0
    %438 = vdwg.mxu0
    %v439 = vadd.f32 %v391, %v434
    %v440 = vmul.f32 %v439, 0.5
    %v441 = vsel %vm40, %v439, %v440
    %v442 = vtanh.pop %v441
    %v443 = vmul.f32 %v442, 0.5
    %v444 = vadd.f32 %v443, 0.5
    %v445 = vsel %vm40, %v442, %v444
    %v446 = vmul.f32 %v445, %v381
    %448 = vrot.lane.b32.xlu0 %v445, 64
    %v449 = vpop.permute.xlu0 %448
    %v451 = vmul.f32 %v445, %v449
    %453 = vrot.lane.b32.xlu0 %v451, 32
    %v454 = vpop.permute.xlu0 %453
    %v456 = vadd.f32 %v446, %v454
    %v457 = vtanh.pop %v456
    %459 = vrot.lane.b32.xlu0 %v457, 64
    %v460 = vpop.permute.xlu0 %459
    %v462 = vmul.f32 %v445, %v460
    %v465 = vunpack.c.l.s4 1983009808
    %v466 = vunpack.c.0.s8 %v465
    %v467 = vlaneseq
    %v468 = vshrl.u32 %v467, 7
    %v469 = vsub.s32 %v466, %v468
    %v470 = vrot.slane %v462, %v469
    %471 = vrot.lane.b32.xlu0 %v470, 32
    %v472 = vpop.permute.xlu0 %471
    %474 = vst.msk [vmem:[%s4 + $0x2] sm:$0x3] %vm141, %v472
    %v475 = vld [vmem:[%s0 + $0x5] sm:$0x1]
    %v476 = vunpack.c.l.bf16 %v475
    %v477 = vpack.c.bf16 %v462, %v462
    %479 = vrot.lane.b32.xlu0 %v477, 32
    %v480 = vpop.permute.xlu0 %479
    %v482 = vsel %vm58, %v480, 0
    %484 = vmatprep.subr.bf16.mxu0 0
    %485 = vmatpush1.bf16.msra.mxu0 0
    %486 = vmatprep.subr.bf16.mxu0 0
    %487 = vmatpush1.bf16.msra.mxu0 0
    %488 = vmatprep.subr.bf16.mxu0 0
    %489 = vmatpush1.bf16.msra.mxu0 0
    %490 = vmatprep.subr.bf16.mxu0 0
    %491 = vmatpush1.bf16.msra.mxu0 0
    %492 = vmatprep.subr.bf16.mxu0 0
    %493 = vmatpush1.bf16.msra.mxu0 0
    %494 = vmatprep.subr.bf16.mxu0 0
    %495 = vmatpush1.bf16.msra.mxu0 0
    %496 = vmatprep.subr.bf16.mxu0 0
    %497 = vmatpush1.bf16.msra.mxu0 %v55
    %498 = vmatprep.subr.bf16.mxu0 0
    %499 = vmatpush1.bf16.msra.mxu0 %v54
    %500 = vmatprep.subr.bf16.mxu0 0
    %501 = vmatpush2.bf16.msra.mxu0 0
    %502 = vmatprep.subr.bf16.mxu0 0
    %503 = vmatpush2.bf16.msra.mxu0 0
    %504 = vmatprep.subr.bf16.mxu0 0
    %505 = vmatpush2.bf16.msra.mxu0 0
    %506 = vmatprep.subr.bf16.mxu0 0
    %507 = vmatpush2.bf16.msra.mxu0 0
    %508 = vmatprep.subr.bf16.mxu0 0
    %509 = vmatpush2.bf16.msra.mxu0 0
    %510 = vmatprep.subr.bf16.mxu0 0
    %511 = vmatpush2.bf16.msra.mxu0 0
    %512 = vmatprep.subr.bf16.mxu0 0
    %513 = vmatpush2.bf16.msra.mxu0 0
    %514 = vmatprep.subr.bf16.mxu0 0
    %515 = vmatpush2.bf16.msra.mxu0 0
    %516 = vmatprep.mubr.bf16.mxu0 0
    %517 = vmatmul.mubr.bf16.gmra.mxu0 %v482
    %v518 = vpop.f32.mrf.mxu0
    %v519 = vadd.f32 0.0, %v518
    %v520 = vpop.f32.mrf.mxu0
    %v521 = vpop.f32.mrf.mxu0
    %v522 = vpop.f32.mrf.mxu0
    %523 = vdwg.mxu0
    %v524 = vadd.f32 %v476, %v519
    %v525 = vmul.f32 %v524, 0.5
    %v526 = vsel %vm40, %v524, %v525
    %v527 = vtanh.pop %v526
    %v528 = vmul.f32 %v527, 0.5
    %v529 = vadd.f32 %v528, 0.5
    %v530 = vsel %vm40, %v527, %v529
    %v531 = vmul.f32 %v530, %v456
    %533 = vrot.lane.b32.xlu0 %v530, 64
    %v534 = vpop.permute.xlu0 %533
    %v536 = vmul.f32 %v530, %v534
    %538 = vrot.lane.b32.xlu0 %v536, 32
    %v539 = vpop.permute.xlu0 %538
    %v541 = vadd.f32 %v531, %v539
    %v542 = vtanh.pop %v541
    %544 = vrot.lane.b32.xlu0 %v542, 64
    %v545 = vpop.permute.xlu0 %544
    %v547 = vmul.f32 %v530, %v545
    %v550 = vunpack.c.l.s4 1983009808
    %v551 = vunpack.c.0.s8 %v550
    %v552 = vlaneseq
    %v553 = vshrl.u32 %v552, 7
    %v554 = vsub.s32 %v551, %v553
    %v555 = vrot.slane %v547, %v554
    %556 = vrot.lane.b32.xlu0 %v555, 64
    %v557 = vpop.permute.xlu0 %556
    %559 = vst.msk [vmem:[%s4 + $0x2] sm:$0x3] %vm227, %v557
    %v560 = vld [vmem:[%s0 + $0x6] sm:$0x1]
    %v561 = vunpack.c.l.bf16 %v560
    %v562 = vpack.c.bf16 %v547, %v547
    %564 = vrot.lane.b32.xlu0 %v562, 32
    %v565 = vpop.permute.xlu0 %564
    %v567 = vsel %vm58, %v565, 0
    %569 = vmatprep.subr.bf16.mxu0 0
    %570 = vmatpush1.bf16.msra.mxu0 0
    %571 = vmatprep.subr.bf16.mxu0 0
    %572 = vmatpush1.bf16.msra.mxu0 0
    %573 = vmatprep.subr.bf16.mxu0 0
    %574 = vmatpush1.bf16.msra.mxu0 0
    %575 = vmatprep.subr.bf16.mxu0 0
    %576 = vmatpush1.bf16.msra.mxu0 0
    %577 = vmatprep.subr.bf16.mxu0 0
    %578 = vmatpush1.bf16.msra.mxu0 0
    %579 = vmatprep.subr.bf16.mxu0 0
    %580 = vmatpush1.bf16.msra.mxu0 0
    %581 = vmatprep.subr.bf16.mxu0 0
    %582 = vmatpush1.bf16.msra.mxu0 %v55
    %583 = vmatprep.subr.bf16.mxu0 0
    %584 = vmatpush1.bf16.msra.mxu0 %v54
    %585 = vmatprep.subr.bf16.mxu0 0
    %586 = vmatpush2.bf16.msra.mxu0 0
    %587 = vmatprep.subr.bf16.mxu0 0
    %588 = vmatpush2.bf16.msra.mxu0 0
    %589 = vmatprep.subr.bf16.mxu0 0
    %590 = vmatpush2.bf16.msra.mxu0 0
    %591 = vmatprep.subr.bf16.mxu0 0
    %592 = vmatpush2.bf16.msra.mxu0 0
    %593 = vmatprep.subr.bf16.mxu0 0
    %594 = vmatpush2.bf16.msra.mxu0 0
    %595 = vmatprep.subr.bf16.mxu0 0
    %596 = vmatpush2.bf16.msra.mxu0 0
    %597 = vmatprep.subr.bf16.mxu0 0
    %598 = vmatpush2.bf16.msra.mxu0 0
    %599 = vmatprep.subr.bf16.mxu0 0
    %600 = vmatpush2.bf16.msra.mxu0 0
    %601 = vmatprep.mubr.bf16.mxu0 0
    %602 = vmatmul.mubr.bf16.gmra.mxu0 %v567
    %v603 = vpop.f32.mrf.mxu0
    %v604 = vadd.f32 0.0, %v603
    %v605 = vpop.f32.mrf.mxu0
    %v606 = vpop.f32.mrf.mxu0
    %v607 = vpop.f32.mrf.mxu0
    %608 = vdwg.mxu0
    %v609 = vadd.f32 %v561, %v604
    %v610 = vmul.f32 %v609, 0.5
    %v611 = vsel %vm40, %v609, %v610
    %v612 = vtanh.pop %v611
    %v613 = vmul.f32 %v612, 0.5
    %v614 = vadd.f32 %v613, 0.5
    %v615 = vsel %vm40, %v612, %v614
    %v616 = vmul.f32 %v615, %v541
    %618 = vrot.lane.b32.xlu0 %v615, 64
    %v619 = vpop.permute.xlu0 %618
    %v621 = vmul.f32 %v615, %v619
    %623 = vrot.lane.b32.xlu0 %v621, 32
    %v624 = vpop.permute.xlu0 %623
    %v626 = vadd.f32 %v616, %v624
    %v627 = vtanh.pop %v626
    %629 = vrot.lane.b32.xlu0 %v627, 64
    %v630 = vpop.permute.xlu0 %629
    %v632 = vmul.f32 %v615, %v630
    %v635 = vunpack.c.l.s4 1983009808
    %v636 = vunpack.c.0.s8 %v635
    %v637 = vlaneseq
    %v638 = vshrl.u32 %v637, 7
    %v639 = vsub.s32 %v636, %v638
    %v640 = vrot.slane %v632, %v639
    %641 = vrot.lane.b32.xlu0 %v640, 96
    %v642 = vpop.permute.xlu0 %641
    %644 = vst.msk [vmem:[%s4 + $0x2] sm:$0x3] %vm313, %v642
    %v645 = vld [vmem:[%s0 + $0x7] sm:$0x1]
    %v646 = vunpack.c.l.bf16 %v645
    %v647 = vpack.c.bf16 %v632, %v632
    %649 = vrot.lane.b32.xlu0 %v647, 32
    %v650 = vpop.permute.xlu0 %649
    %v652 = vsel %vm58, %v650, 0
    %654 = vmatprep.subr.bf16.mxu0 0
    %655 = vmatpush1.bf16.msra.mxu0 0
    %656 = vmatprep.subr.bf16.mxu0 0
    %657 = vmatpush1.bf16.msra.mxu0 0
    %658 = vmatprep.subr.bf16.mxu0 0
    %659 = vmatpush1.bf16.msra.mxu0 0
    %660 = vmatprep.subr.bf16.mxu0 0
    %661 = vmatpush1.bf16.msra.mxu0 0
    %662 = vmatprep.subr.bf16.mxu0 0
    %663 = vmatpush1.bf16.msra.mxu0 0
    %664 = vmatprep.subr.bf16.mxu0 0
    %665 = vmatpush1.bf16.msra.mxu0 0
    %666 = vmatprep.subr.bf16.mxu0 0
    %667 = vmatpush1.bf16.msra.mxu0 %v55
    %668 = vmatprep.subr.bf16.mxu0 0
    %669 = vmatpush1.bf16.msra.mxu0 %v54
    %670 = vmatprep.subr.bf16.mxu0 0
    %671 = vmatpush2.bf16.msra.mxu0 0
    %672 = vmatprep.subr.bf16.mxu0 0
    %673 = vmatpush2.bf16.msra.mxu0 0
    %674 = vmatprep.subr.bf16.mxu0 0
    %675 = vmatpush2.bf16.msra.mxu0 0
    %676 = vmatprep.subr.bf16.mxu0 0
    %677 = vmatpush2.bf16.msra.mxu0 0
    %678 = vmatprep.subr.bf16.mxu0 0
    %679 = vmatpush2.bf16.msra.mxu0 0
    %680 = vmatprep.subr.bf16.mxu0 0
    %681 = vmatpush2.bf16.msra.mxu0 0
    %682 = vmatprep.subr.bf16.mxu0 0
    %683 = vmatpush2.bf16.msra.mxu0 0
    %684 = vmatprep.subr.bf16.mxu0 0
    %685 = vmatpush2.bf16.msra.mxu0 0
    %686 = vmatprep.mubr.bf16.mxu0 0
    %687 = vmatmul.mubr.bf16.gmra.mxu0 %v652
    %v688 = vpop.f32.mrf.mxu0
    %v689 = vadd.f32 0.0, %v688
    %v690 = vpop.f32.mrf.mxu0
    %v691 = vpop.f32.mrf.mxu0
    %v692 = vpop.f32.mrf.mxu0
    %693 = vdwg.mxu0
    %v694 = vadd.f32 %v646, %v689
    %v695 = vmul.f32 %v694, 0.5
    %v696 = vsel %vm40, %v694, %v695
    %v697 = vtanh.pop %v696
    %v698 = vmul.f32 %v697, 0.5
    %v699 = vadd.f32 %v698, 0.5
    %v700 = vsel %vm40, %v697, %v699
    %v701 = vmul.f32 %v700, %v626
    %703 = vrot.lane.b32.xlu0 %v700, 64
    %v704 = vpop.permute.xlu0 %703
    %v706 = vmul.f32 %v700, %v704
    %708 = vrot.lane.b32.xlu0 %v706, 32
    %v709 = vpop.permute.xlu0 %708
    %v711 = vadd.f32 %v701, %v709
    %v712 = vtanh.pop %v711
    %714 = vrot.lane.b32.xlu0 %v712, 64
    %v715 = vpop.permute.xlu0 %714
    %v717 = vmul.f32 %v700, %v715
    %718 = vst.msk [vmem:[%s4 + $0x2] sm:$0x3] %vm388, %v717
    %720 = vrot.lane.b32.xlu0 %v717, 32
    %v721 = vpop.permute.xlu0 %720
    %723 = vst.msk [vmem:[#allocation2] sm:$0x3] %vm141, %v721
    %725 = vrot.lane.b32.xlu0 %v711, 96
    %v726 = vpop.permute.xlu0 %725
    %728 = vst.msk [vmem:[#allocation3] sm:$0x3] %vm141, %v726
    %729 = vst.msk [vmem:[#allocation4] sm:$0x3] %vm141, %v721
    %730 = vst.msk [vmem:[#allocation6] sm:$0x3] %vm141, %v726
    // Predicated region
    $region22: #{decoder_forward.1} parent=1 // pred_check
      _
    $region23: #{decoder_forward.1} parent=1 // pred_check_branch
      %732 = sbr.rel (0) target = $region25
    $region24: #{decoder_forward.1} parent=1 // pred_region
      _
    $region25: #{decoder_forward.1} parent=1 // pred_fallthru
      _
    // Predicated region
    $region26: #{decoder_forward.1} parent=1 // pred_check
      _
    $region27: #{decoder_forward.1} parent=1 // pred_check_branch
      %734 = sbr.rel (0) target = $region29
    $region28: #{decoder_forward.1} parent=1 // pred_region
      %s736 = ssub.s32 32, 32
      %737 = vsyncadd [#allocation5], %s736
      %s739 = sshll.u32 [#allocation4], 4
      %s740 = int_to_ptr.vmem [resolvable:$true] %s739
      %742 = dma.vmem_to_hbm [thread:$0]  %s740, 32, %s5, [#allocation5]
    $region29: #{decoder_forward.1} parent=1 // pred_fallthru
      _
    // Predicated region
    $region30: #{decoder_forward.1} parent=1 // pred_check
      _
    $region31: #{decoder_forward.1} parent=1 // pred_check_branch
      %744 = sbr.rel (0) target = $region33
    $region32: #{decoder_forward.1} parent=1 // pred_region
      %s746 = ssub.s32 32, 32
      %747 = vsyncadd [#allocation7], %s746
      %s749 = sshll.u32 [#allocation6], 4
      %s750 = int_to_ptr.vmem [resolvable:$true] %s749
      %752 = dma.vmem_to_hbm [thread:$0]  %s750, 32, %s6, [#allocation7]
    $region33: #{decoder_forward.1} parent=1 // pred_fallthru
      _
    // Predicated region
    $region34: #{decoder_forward.1} parent=1 // pred_check
      _
    $region35: #{decoder_forward.1} parent=1 // pred_check_branch
      %754 = sbr.rel (0) target = $region37
    $region36: #{decoder_forward.1} parent=1 // pred_region
      _
    $region37: #{decoder_forward.1} parent=1 // pred_fallthru
      _
    // Predicated region
    $region38: #{decoder_forward.1} parent=1 // pred_check
      _
    $region39: #{decoder_forward.1} parent=1 // pred_check_branch
      %756 = sbr.rel (0) target = $region41
    $region40: #{decoder_forward.1} parent=1 // pred_region
      %757 = dma.done [#allocation5], 32
    $region41: #{decoder_forward.1} parent=1 // pred_fallthru
      _
    // Predicated region
    $region42: #{decoder_forward.1} parent=1 // pred_check
      _
    $region43: #{decoder_forward.1} parent=1 // pred_check_branch
      %759 = sbr.rel (0) target = $region45
    $region44: #{decoder_forward.1} parent=1 // pred_region
      %760 = dma.done [#allocation7], 32
    $region45: #{decoder_forward.1} parent=1 // pred_fallthru
      _
    %761 = vsyncpa [#allocation5], 1
    %762 = vsyncpa [#allocation7], 1

</llo_original>
